<compile_context>
chip_gen: v6e
topology: v6e:2x2x1
jax: 0.10.0
libtpu: 0.0.40
codegen_flags: <defaults>
</compile_context>

<pallas_src>
import jax
import jax.numpy as jnp
from jax.experimental import pallas as pl
from jax.experimental.pallas import tpu as pltpu


def _attn_mask_kernel(x_ref, w_ref, b_ref, o_ref):
    # x_ref: (C, TL)   w_ref: (C, C)   b_ref: (C, 1)   o_ref: (C, TL)
    x = x_ref[...]
    w = w_ref[...]
    b = b_ref[...]                      # f32 bias, broadcasts over lanes

    C = w_ref.shape[0]
    if C >= 256:
        # bf16 MXU operands, f32 accumulate: ~3x MXU throughput; numerically
        # benign since the result only feeds a sigmoid gate.
        mm = jnp.dot(w.astype(jnp.bfloat16), x.astype(jnp.bfloat16),
                     preferred_element_type=jnp.float32)
    else:
        mm = jnp.dot(w, x, preferred_element_type=jnp.float32)

    gate = jax.nn.sigmoid(mm + b)                     # f32, VPU + EUP
    o_ref[...] = (x.astype(jnp.float32) * gate).astype(o_ref.dtype)


def _lane_tile(C: int, L: int, B: int, itemsize: int) -> int:
    """Lane tile along L: a multiple of 128 (or the full L), VMEM-budget-driven."""
    # Per step: x tile + out tile, each double-buffered -> 4 * C * TL * itemsize
    # bytes.  Keep that under ~20 MiB so it fits v7x's 64 MiB VMEM (32 MiB
    # default scoped) with headroom for the resident weights; v5e/v6e have
    # more physical VMEM but v5e's 16 MiB default scoped limit also stays safe
    # together with the raised vmem_limit_bytes below.
    budget = 20 * 1024 * 1024
    tl_cap = max(128, (budget // (4 * C * itemsize) // 128) * 128)
    tl_cap = min(tl_cap, 8192)
    if L <= tl_cap:
        if B == 1 and L >= 256:
            # Keep >= 2 grid steps so DMA overlaps compute and both v7x
            # TensorCores get work.
            return ((L + 255) // 256) * 128
        return L            # full-extent dims are always legal block sizes
    return tl_cap


def attention_mask_1d(x, W, bias):
    """x: (B, C, L), W: (C, C), bias: (C,). Returns (B, C, L)."""
    B, C, L = x.shape
    b2 = bias.reshape(C, 1).astype(jnp.float32)       # bias add stays in f32

    TL = _lane_tile(C, L, B, x.dtype.itemsize)
    grid = (B, pl.cdiv(L, TL))

    return pl.pallas_call(
        _attn_mask_kernel,
        out_shape=jax.ShapeDtypeStruct((B, C, L), x.dtype),
        grid_spec=pltpu.PrefetchScalarGridSpec(
            num_scalar_prefetch=0,
            grid=grid,
            in_specs=[
                # Native-layout x tile: batch squeezed out, channels on the
                # sublane axis, lane-dense L tile.
                pl.BlockSpec((pl.Squeezed(), C, TL), lambda b, j: (b, 0, j)),
                pl.BlockSpec((C, C), lambda b, j: (0, 0)),   # resident weight
                pl.BlockSpec((C, 1), lambda b, j: (0, 0)),   # per-channel bias
            ],
            out_specs=pl.BlockSpec((pl.Squeezed(), C, TL),
                                   lambda b, j: (b, 0, j)),
        ),
        compiler_params=pltpu.CompilerParams(
            dimension_semantics=("parallel", "parallel"),
            vmem_limit_bytes=48 * 1024 * 1024),
    )(x, W, b2)


def _reference(x, W, bias):
    # Pure-JAX reference of the PyTorch forward.
    mask = jnp.einsum("oi,bil->bol", W, x) + bias.reshape(1, -1, 1)
    return x * jax.nn.sigmoid(mask)


if __name__ == "__main__":
    B, C, L = 2, 4, 16
    init = 5.0

    key = jax.random.PRNGKey(0)
    kx, kw, kb = jax.random.split(key, 3)

    x = jax.random.normal(kx, (B, C, L), dtype=jnp.float32)

    # Module parameters: Linear(C, C) with weight = init * I and zero bias at
    # __init__.  A small deterministic perturbation is added so the test also
    # exercises the general (trained-weights) off-diagonal contraction path.
    W = init * jnp.eye(C, dtype=jnp.float32) \
        + 0.1 * jax.random.normal(kw, (C, C), dtype=jnp.float32)
    bias = 0.1 * jax.random.normal(kb, (C,), dtype=jnp.float32)

    out = attention_mask_1d(x, W, bias)
    out = jax.block_until_ready(out)

    ref = _reference(x, W, bias)
    assert out.shape == (B, C, L)
    assert jnp.allclose(out, ref, atol=1e-5, rtol=1e-5), "mismatch vs reference"

    print("KERNEL_OK")
</pallas_src>

<mosaic_0001>
module attributes {stable_mosaic.version = 11 : i64} {
  func.func @_attn_mask_kernel(%arg0: i32, %arg1: i32, %arg2: memref<1x4x16xf32, #tpu.memory_space<vmem>>, %arg3: memref<4x4xf32, #tpu.memory_space<vmem>>, %arg4: memref<4x1xf32, #tpu.memory_space<vmem>>, %arg5: memref<1x4x16xf32, #tpu.memory_space<vmem>>) attributes {dimension_semantics = [#tpu.dimension_semantics<parallel>, #tpu.dimension_semantics<parallel>], iteration_bounds = array<i64: 2, 1>, scalar_prefetch = 0 : i64, scratch_operands = 0 : i64, tpu.core_type = #tpu.core_type<tc>, window_params = [{transform_indices = @transform_0, window_bounds = array<i64: 1, 4, 16>}, {pipeline_mode = #tpu.pipeline_mode<synchronous>, transform_indices = @transform_1, window_bounds = array<i64: 4, 4>}, {pipeline_mode = #tpu.pipeline_mode<synchronous>, transform_indices = @transform_2, window_bounds = array<i64: 4, 1>}, {transform_indices = @transform_3, window_bounds = array<i64: 1, 4, 16>}]} {
    %c0 = arith.constant 0 : index
    %c0_0 = arith.constant 0 : index
    %c0_1 = arith.constant 0 : index
    %0 = vector.load %arg2[%c0, %c0_0, %c0_1] : memref<1x4x16xf32, #tpu.memory_space<vmem>>, vector<1x4x16xf32>
    %1 = vector.shape_cast %0 : vector<1x4x16xf32> to vector<4x16xf32>
    %c0_2 = arith.constant 0 : index
    %c0_3 = arith.constant 0 : index
    %2 = vector.load %arg3[%c0_2, %c0_3] : memref<4x4xf32, #tpu.memory_space<vmem>>, vector<4x4xf32>
    %c0_4 = arith.constant 0 : index
    %c0_5 = arith.constant 0 : index
    %3 = vector.load %arg4[%c0_4, %c0_5] : memref<4x1xf32, #tpu.memory_space<vmem>>, vector<4x1xf32>
    %cst = arith.constant dense<0.000000e+00> : vector<4x16xf32>
    %4 = tpu.matmul %2, %1, %cst {dimension_numbers = #tpu.dot_dimension_numbers<[1], [0], [0], [1], [0, 0, 1, 1], [], []>} : vector<4x4xf32>, vector<4x16xf32>, vector<4x16xf32> -> vector<4x16xf32>
    %5 = vector.broadcast %3 : vector<4x1xf32> to vector<4x16xf32>
    %6 = arith.addf %4, %5 : vector<4x16xf32>
    %7 = arith.negf %6 : vector<4x16xf32>
    %8 = math.exp %7 : vector<4x16xf32>
    %cst_6 = arith.constant 1.000000e+00 : f32
    %9 = vector.broadcast %cst_6 : f32 to vector<4x16xf32>
    %10 = arith.addf %9, %8 : vector<4x16xf32>
    %11 = arith.divf %9, %10 : vector<4x16xf32>
    %12 = arith.mulf %1, %11 : vector<4x16xf32>
    %c0_7 = arith.constant 0 : index
    %c0_8 = arith.constant 0 : index
    %c0_9 = arith.constant 0 : index
    %13 = vector.load %arg5[%c0_7, %c0_8, %c0_9] : memref<1x4x16xf32, #tpu.memory_space<vmem>>, vector<1x4x16xf32>
    %14 = vector.shape_cast %13 : vector<1x4x16xf32> to vector<4x16xf32>
    %15 = vector.shape_cast %12 : vector<4x16xf32> to vector<1x4x16xf32>
    tpu.vector_store %arg5[%c0_7, %c0_8, %c0_9], %15 {strides = array<i32>} : memref<1x4x16xf32, #tpu.memory_space<vmem>>, vector<1x4x16xf32>,
    return
  }
  func.func @transform_0(%arg0: i32, %arg1: i32) -> (i32, i32, i32) {
    %c0_i32 = arith.constant 0 : i32
    %c0_i32_0 = arith.constant 0 : i32
    return %arg0, %c0_i32, %arg1 : i32, i32, i32
  }
  func.func @transform_1(%arg0: i32, %arg1: i32) -> (i32, i32) {
    %c0_i32 = arith.constant 0 : i32
    %c0_i32_0 = arith.constant 0 : i32
    %c0_i32_1 = arith.constant 0 : i32
    return %c0_i32, %c0_i32_0 : i32, i32
  }
  func.func @transform_2(%arg0: i32, %arg1: i32) -> (i32, i32) {
    %c0_i32 = arith.constant 0 : i32
    %c0_i32_0 = arith.constant 0 : i32
    %c0_i32_1 = arith.constant 0 : i32
    return %c0_i32, %c0_i32_0 : i32, i32
  }
  func.func @transform_3(%arg0: i32, %arg1: i32) -> (i32, i32, i32) {
    %c0_i32 = arith.constant 0 : i32
    %c0_i32_0 = arith.constant 0 : i32
    return %arg0, %c0_i32, %arg1 : i32, i32, i32
  }
}

</mosaic_0001>

<llo_original>
// kernel: tpu_custom_call.1
$region0: #{tpu_custom_call.1}
  #allocation0 [shape = 'u32[]', space=smem, size = 0x4, offset = 0x4, fixed_abs, tag = 'smem constant byte address 0x4 - core index']
  #allocation1 [shape = 'u32[144,128]{1,0:T(1,128)}', space=vmem, size = 0x12000, scoped, tag = 'internal scratch']
  %s0 = inlined_call_operand.hbm [shape: f32[2,4,16], index: 0, kind: input, shape index: {}]
  %s1 = inlined_call_operand.vmem [shape: f32[4,4], index: 1, kind: input, shape index: {}]
  %s2 = inlined_call_operand.vmem [shape: f32[4,1], index: 2, kind: input, shape index: {}]
  %s3 = inlined_call_operand.hbm [shape: f32[2,4,16], index: 3, kind: output, shape index: {}]
  %s4 = sld [smem:[#allocation0]]
  $region49: #{tpu_custom_call.1} parent=0
    _
  %s6 = ssub.s32 1, %s4
  %s7 = scalar_select 0, %s6, %s4
  $region1: #{tpu_custom_call.1} parent=0
    #allocation2 [shape = 'u8[4096]{0}', space=vmem, size = 0x1000, scoped, tag = 'input window, operand 0']
    #allocation3 [shape = 's32[2]{0}', space=sflag, size = 0x8, scoped, tag = 'scoped memory for tpu_custom_call.1']
    #allocation4 [shape = 's32[2]{0}', space=sflag, size = 0x8, scoped, tag = 'scoped memory for tpu_custom_call.1']
    #allocation5 [shape = 'u8[4096]{0}', space=vmem, size = 0x1000, scoped, tag = 'output window, operand 0']
    %8 = vsyncpa [#allocation3], 0
    %s9 = scalar_lea.sflag [#allocation3], 1
    %10 = vsyncpa %s9, 0
    %11 = vsyncpa [#allocation4], 0
    %s12 = scalar_lea.sflag [#allocation4], 1
    %13 = vsyncpa %s12, 0
    loop: start=0, step=1, limit=4
    $region2: #{tpu_custom_call.1} parent=1 // loop_pre_header
      _
    $region3: #{tpu_custom_call.1} parent=1 // loop_header
      %s15 = sphi 0, %s19
      %p16 = scmp.ge.s32.totalorder %s15, 4
      %s22 = sphi 0, %s34
      %s23 = sphi 0, %s30
      %s24 = sphi 0, %s22
      %s25 = sphi 0, %s23
      %s26 = sphi 0, %s24
      %s27 = sphi 0, %s25
      %s39 = sphi 0, %s41
      %s42 = sphi 0, %s39
      %s43 = sphi 0, %s42
      %s59 = sphi 0, %s43
      %s63 = sphi 0, %s63
      %s65 = sphi 0, %s63
      %s66 = sphi 0, %s65
      %s80 = sphi 0, %s66
      %s84 = sphi 0, %s84
      %s86 = sphi 0, %s84
      %s87 = sphi 0, %s86
      %s101 = sphi 0, %s87
      %s109 = sphi 0, %s111
      %s112 = sphi 0, %s109
      %s113 = sphi 0, %s112
      %s129 = sphi 0, %s113
    $region4: #{tpu_custom_call.1} parent=1 // loop_header_branch
      %18 = sbr.rel (%p16) target = $region8
    $region5: #{tpu_custom_call.1} parent=1 // loop_body
      %s20 = ssub.s32 %s15, 1
      %s21 = ssub.s32 %s15, 2
      %s28 = sadd.s32 1, %s23
      %p29 = scmp.ge.s32.totalorder %s28, 1
      %s30 = scalar_select %p29, 0, %s28
      %s31 = sadd.s32 1, %s22
      %s32 = scalar_select %p29, %s31, %s22
      %p33 = scmp.ge.s32.totalorder %s32, 2
      %s34 = scalar_select %p33, 0, %s32
      %s35 = ssub.s32 %s22, %s34
      %s36 = ssub.s32 %s23, %s30
      %s37 = sor.u32 %s35, %s36
      %p38 = scmp.eq.s32.totalorder %s37, 0
      %s40 = sadd.s32 %s39, 1
      %s41 = scalar_select %p38, %s39, %s40
      %p44 = pneg %p38
      %p45 = scmp.eq.s32.totalorder %s15, 1
      %p46 = por %p44, %p45
      %p47 = scmp.ne.s32.totalorder %s39, %s42
      %p48 = scmp.eq.s32.totalorder %s15, 0
      %p49 = por %p47, %p48
      %p50 = scmp.ne.s32.totalorder %s39, %s42
      %p51 = scmp.eq.s32.totalorder %s20, 1
      %p52 = por %p50, %p51
      %p53 = scmp.ne.s32.totalorder %s42, %s43
      %p54 = scmp.eq.s32.totalorder %s20, 0
      %p55 = por %p53, %p54
      %p56 = scmp.ne.s32.totalorder %s42, %s43
      %p57 = scmp.eq.s32.totalorder %s21, 1
      %p58 = por %p56, %p57
      %p60 = scmp.ne.s32.totalorder %s43, %s59
      %p61 = scmp.eq.s32.totalorder %s21, 0
      %p62 = por %p60, %p61
      %s64 = sadd.s32 %s63, 1
      %p67 = scmp.eq.s32.totalorder %s15, 1
      %p68 = scmp.ne.s32.totalorder %s63, %s65
      %p69 = scmp.eq.s32.totalorder %s15, 0
      %p70 = por %p68, %p69
      %p71 = scmp.ne.s32.totalorder %s63, %s65
      %p72 = scmp.eq.s32.totalorder %s20, 1
      %p73 = por %p71, %p72
      %p74 = scmp.ne.s32.totalorder %s65, %s66
      %p75 = scmp.eq.s32.totalorder %s20, 0
      %p76 = por %p74, %p75
      %p77 = scmp.ne.s32.totalorder %s65, %s66
      %p78 = scmp.eq.s32.totalorder %s21, 1
      %p79 = por %p77, %p78
      %p81 = scmp.ne.s32.totalorder %s66, %s80
      %p82 = scmp.eq.s32.totalorder %s21, 0
      %p83 = por %p81, %p82
      %s85 = sadd.s32 %s84, 1
      %p88 = scmp.eq.s32.totalorder %s15, 1
      %p89 = scmp.ne.s32.totalorder %s84, %s86
      %p90 = scmp.eq.s32.totalorder %s15, 0
      %p91 = por %p89, %p90
      %p92 = scmp.ne.s32.totalorder %s84, %s86
      %p93 = scmp.eq.s32.totalorder %s20, 1
      %p94 = por %p92, %p93
      %p95 = scmp.ne.s32.totalorder %s86, %s87
      %p96 = scmp.eq.s32.totalorder %s20, 0
      %p97 = por %p95, %p96
      %p98 = scmp.ne.s32.totalorder %s86, %s87
      %p99 = scmp.eq.s32.totalorder %s21, 1
      %p100 = por %p98, %p99
      %p102 = scmp.ne.s32.totalorder %s87, %s101
      %p103 = scmp.eq.s32.totalorder %s21, 0
      %p104 = por %p102, %p103
      %s105 = ssub.s32 %s22, %s34
      %s106 = ssub.s32 %s23, %s30
      %s107 = sor.u32 %s105, %s106
      %p108 = scmp.eq.s32.totalorder %s107, 0
      %s110 = sadd.s32 %s109, 1
      %s111 = scalar_select %p108, %s109, %s110
      %p114 = pneg %p108
      %p115 = scmp.eq.s32.totalorder %s15, 1
      %p116 = por %p114, %p115
      %p117 = scmp.ne.s32.totalorder %s109, %s112
      %p118 = scmp.eq.s32.totalorder %s15, 0
      %p119 = por %p117, %p118
      %p120 = scmp.ne.s32.totalorder %s109, %s112
      %p121 = scmp.eq.s32.totalorder %s20, 1
      %p122 = por %p120, %p121
      %p123 = scmp.ne.s32.totalorder %s112, %s113
      %p124 = scmp.eq.s32.totalorder %s20, 0
      %p125 = por %p123, %p124
      %p126 = scmp.ne.s32.totalorder %s112, %s113
      %p127 = scmp.eq.s32.totalorder %s21, 1
      %p128 = por %p126, %p127
      %p130 = scmp.ne.s32.totalorder %s113, %s129
      %p131 = scmp.eq.s32.totalorder %s21, 0
      %p132 = por %p130, %p131
      %p133 = scmp.le.s32.totalorder 1, %s15
      %p134 = scmp.lt.s32.totalorder %s15, 3
      %p135 = pnand %p133, %p134
      %p136 = pneg %p135
      // Predicated region
      $region9: #{tpu_custom_call.1} parent=5 // pred_check
        _
      $region10: #{tpu_custom_call.1} parent=5 // pred_check_branch
        %138 = sbr.rel (%p135) target = $region12
      $region11: #{tpu_custom_call.1} parent=5 // pred_region
        %s139 = ssub.s32 %s15, 1
        // Predicated region
        $region13: #{tpu_custom_call.1} parent=11 // pred_check
          %p140 = pneg %p76
        $region14: #{tpu_custom_call.1} parent=11 // pred_check_branch
          %142 = sbr.rel (%p140) target = $region16
        $region15: #{tpu_custom_call.1} parent=11 // pred_region
          _
        $region16: #{tpu_custom_call.1} parent=11 // pred_fallthru
          _
        // Predicated region
        $region17: #{tpu_custom_call.1} parent=11 // pred_check
          %p143 = pneg %p97
        $region18: #{tpu_custom_call.1} parent=11 // pred_check_branch
          %145 = sbr.rel (%p143) target = $region20
        $region19: #{tpu_custom_call.1} parent=11 // pred_region
          _
        $region20: #{tpu_custom_call.1} parent=11 // pred_fallthru
          _
      $region12: #{tpu_custom_call.1} parent=5 // pred_fallthru
        _
      %p146 = scmp.lt.s32.totalorder %s15, 2
      // Predicated region
      $region21: #{tpu_custom_call.1} parent=5 // pred_check
        %p147 = pneg %p146
      $region22: #{tpu_custom_call.1} parent=5 // pred_check_branch
        %149 = sbr.rel (%p147) target = $region24
      $region23: #{tpu_custom_call.1} parent=5 // pred_region
        // Predicated region
        $region25: #{tpu_custom_call.1} parent=23 // pred_check
          %p150 = pneg %p49
        $region26: #{tpu_custom_call.1} parent=23 // pred_check_branch
          %152 = sbr.rel (%p150) target = $region28
        $region27: #{tpu_custom_call.1} parent=23 // pred_region
          %s153 = sand.u32 %s39, 1
          %s154 = scalar_lea.sflag [#allocation3], %s153
          %s155 = sand.u32 %s39, 1
          %s156 = smul.addr %s155, 4
          %s157 = scalar_lea.vmem [#allocation2], %s156
          %s159 = ssub.s32 64, 64
          %160 = vsyncadd %s154, %s159
          %s161 = sadd.s32 %s23, %s22
          %s162 = smul.addr %s161, 64
          %s163 = scalar_lea.hbm %s0, %s162
          %s165 = sshll.u32 %s157, 4
          %s166 = int_to_ptr.vmem [resolvable:$true] %s165
          %168 = dma.hbm_to_vmem [thread:$0]  %s163, 64, %s166, %s154
        $region28: #{tpu_custom_call.1} parent=23 // pred_fallthru
          _
      $region24: #{tpu_custom_call.1} parent=5 // pred_fallthru
        _
      %p169 = scmp.le.s32.totalorder 1, %s15
      %p170 = scmp.lt.s32.totalorder %s15, 3
      %p171 = pnand %p169, %p170
      %p172 = pneg %p171
      // Predicated region
      $region29: #{tpu_custom_call.1} parent=5 // pred_check
        _
      $region30: #{tpu_custom_call.1} parent=5 // pred_check_branch
        %174 = sbr.rel (%p171) target = $region32
      $region31: #{tpu_custom_call.1} parent=5 // pred_region
        %s175 = ssub.s32 %s15, 1
        %s176 = sand.u32 %s42, 1
        %s177 = scalar_lea.sflag [#allocation3], %s176
        %s178 = sand.u32 %s42, 1
        %s179 = smul.addr %s178, 4
        %s180 = scalar_lea.vmem [#allocation2], %s179
        // Predicated region
        $region33: #{tpu_custom_call.1} parent=31 // pred_check
          %p181 = pneg %p55
        $region34: #{tpu_custom_call.1} parent=31 // pred_check_branch
          %183 = sbr.rel (%p181) target = $region36
        $region35: #{tpu_custom_call.1} parent=31 // pred_region
          %184 = dma.done %s177, 64
        $region36: #{tpu_custom_call.1} parent=31 // pred_fallthru
          _
        %s185 = sand.u32 %s42, 1
        %s186 = scalar_lea.sflag [#allocation3], %s185
        %s187 = sand.u32 %s42, 1
        %s188 = smul.addr %s187, 4
        %s189 = scalar_lea.vmem [#allocation2], %s188
        %p190 = pneg %p55
        %p191 = pneg %p52
        %p192 = pneg %p76
        %p193 = pneg %p73
        %p194 = pneg %p97
        %p195 = pneg %p94
        %p196 = pneg %p125
        %p197 = pneg %p122
        %s198 = sand.u32 %s112, 1
        %s199 = scalar_lea.sflag [#allocation4], %s198
        %s200 = sand.u32 %s112, 1
        %s201 = smul.addr %s200, 4
        %s202 = scalar_lea.vmem [#allocation5], %s201
        %v203 = vld [vmem:[%s180] sm:$0xf]
        %v204 = vld [vmem:[%s1] sm:$0xf]
        %v205 = vld [vmem:[%s2] sm:$0xf]
        %207 = vset.pattern.permute.xlu0 0
        %208 = vperm.xlu0 %207, %v205
        %v209 = vpop.permute.xlu0 %208
        %vm211 = vcmask 31744
        %v213 = vsel %vm211, %v204, 0
        %vm215 = vcmask 1043456
        %v217 = vsel %vm215, %v203, 0
        %219 = vmatprep.subr.mxu0 0.0
        %220 = vmatpush1.msra.mxu0 0.0
        %221 = vmatprep.subr.mxu0 0.0
        %222 = vmatpush1.msra.mxu0 0.0
        %223 = vmatprep.subr.mxu0 0.0
        %224 = vmatpush1.msra.mxu0 0.0
        %225 = vmatprep.subr.mxu0 0.0
        %226 = vmatpush1.msra.mxu0 0.0
        %227 = vmatprep.subr.mxu0 0.0
        %228 = vmatpush1.msra.mxu0 0.0
        %229 = vmatprep.subr.mxu0 0.0
        %230 = vmatpush1.msra.mxu0 0.0
        %231 = vmatprep.subr.mxu0 0.0
        %232 = vmatpush1.msra.mxu0 0.0
        %233 = vmatprep.subr.mxu0 0.0
        %234 = vmatpush1.msra.mxu0 0.0
        %235 = vmatprep.subr.mxu0 0.0
        %236 = vmatpush1.msra.mxu0 0.0
        %237 = vmatprep.subr.mxu0 0.0
        %238 = vmatpush1.msra.mxu0 0.0
        %239 = vmatprep.subr.mxu0 0.0
        %240 = vmatpush1.msra.mxu0 0.0
        %241 = vmatprep.subr.mxu0 0.0
        %242 = vmatpush1.msra.mxu0 0.0
        %243 = vmatprep.subr.mxu0 0.0
        %244 = vmatpush1.msra.mxu0 0.0
        %245 = vmatprep.subr.mxu0 0.0
        %246 = vmatpush1.msra.mxu0 0.0
        %247 = vmatprep.subr.mxu0 0.0
        %248 = vmatpush1.msra.mxu0 0.0
        %249 = vmatprep.subr.mxu0 0.0
        %250 = vmatpush1.msra.mxu0 %v217
        %251 = vmatprep.subr.mxu0 0.0
        %252 = vmatpush2.msra.mxu0 0.0
        %253 = vmatprep.subr.mxu0 0.0
        %254 = vmatpush2.msra.mxu0 0.0
        %255 = vmatprep.subr.mxu0 0.0
        %256 = vmatpush2.msra.mxu0 0.0
        %257 = vmatprep.subr.mxu0 0.0
        %258 = vmatpush2.msra.mxu0 0.0
        %259 = vmatprep.subr.mxu0 0.0
        %260 = vmatpush2.msra.mxu0 0.0
        %261 = vmatprep.subr.mxu0 0.0
        %262 = vmatpush2.msra.mxu0 0.0
        %263 = vmatprep.subr.mxu0 0.0
        %264 = vmatpush2.msra.mxu0 0.0
        %265 = vmatprep.subr.mxu0 0.0
        %266 = vmatpush2.msra.mxu0 0.0
        %267 = vmatprep.subr.mxu0 0.0
        %268 = vmatpush2.msra.mxu0 0.0
        %269 = vmatprep.subr.mxu0 0.0
        %270 = vmatpush2.msra.mxu0 0.0
        %271 = vmatprep.subr.mxu0 0.0
        %272 = vmatpush2.msra.mxu0 0.0
        %273 = vmatprep.subr.mxu0 0.0
        %274 = vmatpush2.msra.mxu0 0.0
        %275 = vmatprep.subr.mxu0 0.0
        %276 = vmatpush2.msra.mxu0 0.0
        %277 = vmatprep.subr.mxu0 0.0
        %278 = vmatpush2.msra.mxu0 0.0
        %279 = vmatprep.subr.mxu0 0.0
        %280 = vmatpush2.msra.mxu0 0.0
        %281 = vmatprep.subr.mxu0 0.0
        %282 = vmatpush2.msra.mxu0 0.0
        %283 = vmatprep.mubr.f32.mxu0 0.0
        %284 = vmatmul.mubr.f32.gmra.mxu0 %v213
        %v285 = vpop.f32.mrf.mxu0
        %v286 = vadd.f32 %v209, %v285
        %v287 = vpop.f32.mrf.mxu0
        %288 = vdwg.mxu0
        %v289 = vxor.u32 %v286, 2147483648
        %v290 = vmul.f32 %v289, 1.442695
        %v291 = vpow.pop %v290
        %v292 = vadd.f32 %v291, 1.0
        %v293 = vrcp.pop %v292
        %v294 = vmul.f32 1.0, %v293
        %v295 = vmul.f32 %v203, %v294
        %vm296 = vcmask 125952
        %297 = vst.msk [vmem:[%s202] sm:$0xf] %vm296, %v295
        %s298 = sand.u32 %s112, 1
        %s299 = scalar_lea.sflag [#allocation4], %s298
        %s300 = sand.u32 %s112, 1
        %s301 = smul.addr %s300, 4
        %s302 = scalar_lea.vmem [#allocation5], %s301
        // Predicated region
        $region37: #{tpu_custom_call.1} parent=31 // pred_check
          %p303 = pneg %p122
        $region38: #{tpu_custom_call.1} parent=31 // pred_check_branch
          %305 = sbr.rel (%p303) target = $region40
        $region39: #{tpu_custom_call.1} parent=31 // pred_region
          %s307 = ssub.s32 64, 64
          %308 = vsyncadd %s299, %s307
          %s309 = sadd.s32 %s25, %s24
          %s310 = smul.addr %s309, 64
          %s311 = scalar_lea.hbm %s3, %s310
          %s313 = sshll.u32 %s302, 4
          %s314 = int_to_ptr.vmem [resolvable:$true] %s313
          %316 = dma.vmem_to_hbm [thread:$0]  %s314, 64, %s311, %s299
        $region40: #{tpu_custom_call.1} parent=31 // pred_fallthru
          _
      $region32: #{tpu_custom_call.1} parent=5 // pred_fallthru
        _
      %p317 = scmp.le.s32.totalorder 2, %s15
      // Predicated region
      $region41: #{tpu_custom_call.1} parent=5 // pred_check
        %p318 = pneg %p317
      $region42: #{tpu_custom_call.1} parent=5 // pred_check_branch
        %320 = sbr.rel (%p318) target = $region44
      $region43: #{tpu_custom_call.1} parent=5 // pred_region
        %s321 = ssub.s32 %s15, 2
        // Predicated region
        $region45: #{tpu_custom_call.1} parent=43 // pred_check
          %p322 = pneg %p128
        $region46: #{tpu_custom_call.1} parent=43 // pred_check_branch
          %324 = sbr.rel (%p322) target = $region48
        $region47: #{tpu_custom_call.1} parent=43 // pred_region
          %s325 = sand.u32 %s113, 1
          %s326 = scalar_lea.sflag [#allocation4], %s325
          %s327 = sand.u32 %s113, 1
          %s328 = smul.addr %s327, 4
          %s329 = scalar_lea.vmem [#allocation5], %s328
          %330 = dma.done %s326, 64
        $region48: #{tpu_custom_call.1} parent=43 // pred_fallthru
          _
      $region44: #{tpu_custom_call.1} parent=5 // pred_fallthru
        _
    $region6: #{tpu_custom_call.1} parent=1 // loop_footer
      %s19 = sadd.s32 1, %s15
    $region7: #{tpu_custom_call.1} parent=1 // loop_footer_branch
      %14 = sbr.rel target = $region3
    $region8: #{tpu_custom_call.1} parent=1 // loop_exit
      _
    %331 = vsyncpa [#allocation3], 1
    %s332 = scalar_lea.sflag [#allocation3], 1
    %333 = vsyncpa %s332, 1
    %334 = vsyncpa [#allocation4], 1
    %s335 = scalar_lea.sflag [#allocation4], 1
    %336 = vsyncpa %s335, 1

</llo_original>
